<compile_context>
chip_gen: v5e
topology: v5e:2x2
jax: 0.10.0
libtpu: 0.0.40
codegen_flags: <defaults>
</compile_context>

<pallas_src>
import jax
import jax.numpy as jnp
import numpy as np
from jax import lax
from jax.experimental import pallas as pl
from jax.experimental.pallas import tpu as pltpu

EPS = 1e-5
LANE = 128
SUB = 16          # bf16 sublane packing -> pad M to a multiple of 16


def _fused_conv_kernel(x_ref, w_ref, b_ref, o_ref):
    """Whole problem in one step: a single MXU matmul + bias add.

    x_ref : (Mp, KKC)   bf16 im2col slab (all batch elements, rows zero-padded)
    w_ref : (KKC, C2p)  bf16 fused weights (conv1*bn1*conv_last*bn_last), 128-lane padded
    b_ref : (1, C2p)    f32  fused bias
    o_ref : (Mp, C2p)   f32  lane-dense output slab
    """
    y = jnp.dot(x_ref[...], w_ref[...], preferred_element_type=jnp.float32)
    o_ref[...] = y + b_ref[...]


def attention_local_conv(x_nchw, w1_oihw, b1, bn1, w2_oihw, b2, bn2, *, K, d):
    """x_nchw: (N, Cin, H, W) f32.  Returns (N, Cout2, Hout, Wout) f32."""
    N, Cin, H, W = x_nchw.shape
    pad = int((d * (K - 1) - 1) / 2)            # PyTorch float padding, floored
    Hout = H + 2 * pad - d * (K - 1)
    Wout = W + 2 * pad - d * (K - 1)
    Cout1 = w1_oihw.shape[0]
    Cout2 = w2_oihw.shape[0]
    C2p = ((Cout2 + LANE - 1) // LANE) * LANE   # pad out-channels to lane tile
    M = N * Hout * Wout                          # batch folded into matmul rows
    Mp = ((M + SUB - 1) // SUB) * SUB            # unmasked sublane loads/stores
    KKC = K * K * Cin

    # ---- fold eval-mode BatchNorm into conv weights, then fold the 1x1 conv
    # ---- into conv1 (exact: two back-to-back linear maps, no activation) ----
    g1, be1, mu1, var1 = bn1
    g2, be2, mu2, var2 = bn2
    s1 = g1 * lax.rsqrt(var1 + EPS)
    s2 = g2 * lax.rsqrt(var2 + EPS)

    # OIHW -> (K, K, Cin, Cout1) -> (K*K*Cin, Cout1); row order = (ky, kx, cin)
    w1_f = jnp.transpose(w1_oihw, (2, 3, 1, 0)).reshape(KKC, Cout1) * s1[None, :]
    b1_f = (b1 - mu1) * s1 + be1
    w2_f = jnp.transpose(w2_oihw[:, :, 0, 0], (1, 0)) * s2[None, :]   # (Cout1, Cout2)
    b2_f = (b2 - mu2) * s2 + be2

    w_fused = w1_f @ w2_f                        # (KKC, Cout2), f32 fold
    b_fused = b1_f @ w2_f + b2_f                 # (Cout2,)
    w_p = jnp.pad(w_fused, ((0, 0), (0, C2p - Cout2))).astype(jnp.bfloat16)
    b_p = jnp.pad(b_fused, (0, C2p - Cout2))[None, :]        # keep f32 bias

    # ---- layout plumbing (XLA side): NCHW -> NHWC, pad, im2col slab ----
    x = jnp.transpose(x_nchw, (0, 2, 3, 1))
    xp = jnp.pad(x, ((0, 0), (pad, pad), (pad, pad), (0, 0)))
    taps = [xp[:, ky * d: ky * d + Hout, kx * d: kx * d + Wout, :]
            for ky in range(K) for kx in range(K)]
    slab = jnp.concatenate(taps, axis=-1).reshape(M, KKC)    # (N*Hout*Wout, KKC)
    slab = jnp.pad(slab, ((0, Mp - M), (0, 0))).astype(jnp.bfloat16)

    out = pl.pallas_call(
        _fused_conv_kernel,
        out_shape=jax.ShapeDtypeStruct((Mp, C2p), jnp.float32),
        grid=(1,),
        in_specs=[
            pl.BlockSpec((Mp, KKC), lambda i: (0, 0)),
            pl.BlockSpec((KKC, C2p), lambda i: (0, 0)),
            pl.BlockSpec((1, C2p), lambda i: (0, 0)),
        ],
        out_specs=pl.BlockSpec((Mp, C2p), lambda i: (0, 0)),
        compiler_params=pltpu.CompilerParams(
            dimension_semantics=("arbitrary",)),
    )(slab, w_p, b_p)

    out = out[:M, :Cout2].reshape(N, Hout, Wout, Cout2)
    return jnp.transpose(out, (0, 3, 1, 2))                   # back to NCHW


def reference(x, w1_t, b1, bn1, w2_t, b2, bn2, K, d):
    """Pure-JAX f32 reference matching PyTorch eval-mode forward (NCHW)."""
    pad = int((d * (K - 1) - 1) / 2)
    dn1 = lax.conv_dimension_numbers(x.shape, w1_t.shape, ('NCHW', 'OIHW', 'NCHW'))
    y = lax.conv_general_dilated(x, w1_t, (1, 1), [(pad, pad), (pad, pad)],
                                 rhs_dilation=(d, d), dimension_numbers=dn1,
                                 precision=lax.Precision.HIGHEST)
    y = y + b1[None, :, None, None]
    g, be, mu, var = bn1
    y = (y - mu[None, :, None, None]) / jnp.sqrt(var[None, :, None, None] + EPS) \
        * g[None, :, None, None] + be[None, :, None, None]

    dn2 = lax.conv_dimension_numbers(y.shape, w2_t.shape, ('NCHW', 'OIHW', 'NCHW'))
    z = lax.conv_general_dilated(y, w2_t, (1, 1), [(0, 0), (0, 0)],
                                 dimension_numbers=dn2,
                                 precision=lax.Precision.HIGHEST)
    z = z + b2[None, :, None, None]
    g2, be2, mu2, var2 = bn2
    z = (z - mu2[None, :, None, None]) / jnp.sqrt(var2[None, :, None, None] + EPS) \
        * g2[None, :, None, None] + be2[None, :, None, None]
    return z


if __name__ == "__main__":
    # Small config consistent with the module's forward:
    # inchannel=4, conv1_filter=3, conv1_dilation=2, conv1_outchannel=32,
    # conv_last_outchannel=16, input (N=2, C=4, H=W=16)
    N, Cin, H, W = 2, 4, 16, 16
    K, d = 3, 2
    Cout1, Cout2 = 32, 16

    ks = jax.random.split(jax.random.PRNGKey(0), 13)
    x = jax.random.normal(ks[0], (N, Cin, H, W), jnp.float32)

    # conv weights in PyTorch OIHW layout (deterministic synthetic init)
    w1_t = 0.1 * jax.random.normal(ks[1], (Cout1, Cin, K, K), jnp.float32)
    b1 = 0.1 * jax.random.normal(ks[2], (Cout1,), jnp.float32)
    w2_t = 0.1 * jax.random.normal(ks[3], (Cout2, Cout1, 1, 1), jnp.float32)
    b2 = 0.1 * jax.random.normal(ks[4], (Cout2,), jnp.float32)

    # batchnorm params / running stats (inference mode)
    g1 = 1.0 + 0.1 * jax.random.normal(ks[5], (Cout1,), jnp.float32)
    be1 = 0.1 * jax.random.normal(ks[6], (Cout1,), jnp.float32)
    mu1 = 0.1 * jax.random.normal(ks[7], (Cout1,), jnp.float32)
    var1 = 1.0 + 0.5 * jax.random.uniform(ks[8], (Cout1,), jnp.float32)
    g2 = 1.0 + 0.1 * jax.random.normal(ks[9], (Cout2,), jnp.float32)
    be2 = 0.1 * jax.random.normal(ks[10], (Cout2,), jnp.float32)
    mu2 = 0.1 * jax.random.normal(ks[11], (Cout2,), jnp.float32)
    var2 = 1.0 + 0.5 * jax.random.uniform(ks[12], (Cout2,), jnp.float32)

    out = attention_local_conv(x, w1_t, b1, (g1, be1, mu1, var1),
                               w2_t, b2, (g2, be2, mu2, var2), K=K, d=d)
    out = jax.block_until_ready(out)

    ref = reference(x, w1_t, b1, (g1, be1, mu1, var1), w2_t, b2,
                    (g2, be2, mu2, var2), K, d)
    # bf16 inputs/weights with f32 accumulate -> relaxed tolerance
    np.testing.assert_allclose(np.asarray(out), np.asarray(ref),
                               rtol=2e-2, atol=2e-2)
    print("KERNEL_OK")
</pallas_src>

<mosaic_0001>
module attributes {stable_mosaic.version = 11 : i64} {
  func.func @_fused_conv_kernel(%arg0: i32, %arg1: memref<400x36xbf16, #tpu.memory_space<vmem>>, %arg2: memref<36x128xbf16, #tpu.memory_space<vmem>>, %arg3: memref<1x128xf32, #tpu.memory_space<vmem>>, %arg4: memref<400x128xf32, #tpu.memory_space<vmem>>) attributes {dimension_semantics = [#tpu.dimension_semantics<arbitrary>], iteration_bounds = array<i64: 1>, scalar_prefetch = 0 : i64, scratch_operands = 0 : i64, tpu.core_type = #tpu.core_type<tc>, window_params = [{pipeline_mode = #tpu.pipeline_mode<synchronous>, transform_indices = @transform_0, window_bounds = array<i64: 400, 36>}, {pipeline_mode = #tpu.pipeline_mode<synchronous>, transform_indices = @transform_1, window_bounds = array<i64: 36, 128>}, {pipeline_mode = #tpu.pipeline_mode<synchronous>, transform_indices = @transform_2, window_bounds = array<i64: 1, 128>}, {pipeline_mode = #tpu.pipeline_mode<synchronous>, transform_indices = @transform_3, window_bounds = array<i64: 400, 128>}]} {
    %c0 = arith.constant 0 : index
    %c0_0 = arith.constant 0 : index
    %0 = vector.load %arg1[%c0, %c0_0] : memref<400x36xbf16, #tpu.memory_space<vmem>>, vector<400x36xbf16>
    %c0_1 = arith.constant 0 : index
    %c0_2 = arith.constant 0 : index
    %1 = vector.load %arg2[%c0_1, %c0_2] : memref<36x128xbf16, #tpu.memory_space<vmem>>, vector<36x128xbf16>
    %cst = arith.constant dense<0.000000e+00> : vector<400x128xf32>
    %2 = tpu.matmul %0, %1, %cst {dimension_numbers = #tpu.dot_dimension_numbers<[1], [0], [0], [1], [0, 0, 1, 1], [], []>} : vector<400x36xbf16>, vector<36x128xbf16>, vector<400x128xf32> -> vector<400x128xf32>
    %c0_3 = arith.constant 0 : index
    %c0_4 = arith.constant 0 : index
    %3 = vector.load %arg3[%c0_3, %c0_4] : memref<1x128xf32, #tpu.memory_space<vmem>>, vector<1x128xf32>
    %4 = vector.broadcast %3 : vector<1x128xf32> to vector<400x128xf32>
    %5 = arith.addf %2, %4 : vector<400x128xf32>
    %c0_5 = arith.constant 0 : index
    %c0_6 = arith.constant 0 : index
    %6 = vector.load %arg4[%c0_5, %c0_6] : memref<400x128xf32, #tpu.memory_space<vmem>>, vector<400x128xf32>
    tpu.vector_store %arg4[%c0_5, %c0_6], %5 {strides = array<i32>} : memref<400x128xf32, #tpu.memory_space<vmem>>, vector<400x128xf32>,
    return
  }
  func.func @transform_0(%arg0: i32) -> (i32, i32) {
    %c0_i32 = arith.constant 0 : i32
    %c0_i32_0 = arith.constant 0 : i32
    %c0_i32_1 = arith.constant 0 : i32
    return %c0_i32, %c0_i32_0 : i32, i32
  }
  func.func @transform_1(%arg0: i32) -> (i32, i32) {
    %c0_i32 = arith.constant 0 : i32
    %c0_i32_0 = arith.constant 0 : i32
    %c0_i32_1 = arith.constant 0 : i32
    return %c0_i32, %c0_i32_0 : i32, i32
  }
  func.func @transform_2(%arg0: i32) -> (i32, i32) {
    %c0_i32 = arith.constant 0 : i32
    %c0_i32_0 = arith.constant 0 : i32
    %c0_i32_1 = arith.constant 0 : i32
    return %c0_i32, %c0_i32_0 : i32, i32
  }
  func.func @transform_3(%arg0: i32) -> (i32, i32) {
    %c0_i32 = arith.constant 0 : i32
    %c0_i32_0 = arith.constant 0 : i32
    %c0_i32_1 = arith.constant 0 : i32
    return %c0_i32, %c0_i32_0 : i32, i32
  }
}

</mosaic_0001>

<llo_original>
// kernel: tpu_custom_call.1
$region0: #{tpu_custom_call.1}
  #allocation0 [shape = 'u32[]', space=smem, size = 0x4, offset = 0x4, fixed_abs, tag = 'smem constant byte address 0x4 - core index']
  #allocation1 [shape = 'u32[72,128]{1,0:T(1,128)}', space=vmem, size = 0x9000, scoped, tag = 'internal scratch']
  %s0 = inlined_call_operand.vmem [shape: bf16[400,36], index: 0, kind: input, shape index: {}]
  %s1 = inlined_call_operand.vmem [shape: bf16[36,128], index: 1, kind: input, shape index: {}]
  %s2 = inlined_call_operand.vmem [shape: f32[1,128], index: 2, kind: input, shape index: {}]
  %s3 = inlined_call_operand.hbm [shape: f32[400,128], index: 3, kind: output, shape index: {}]
  %s4 = sld [smem:[#allocation0]]
  $region22: #{tpu_custom_call.1} parent=0
    _
  %s6 = ssub.s32 1, %s4
  %s7 = scalar_select 0, %s6, %s4
  $region1: #{tpu_custom_call.1} parent=0
    #allocation2 [shape = 'u8[204800]{0}', space=vmem, size = 0x32000, scoped, tag = 'output window, operand 0, single buffered']
    #allocation3 [shape = 's32[1]{0}', space=sflag, size = 0x4, scoped, tag = 'scoped memory for tpu_custom_call.1']
    %8 = vsyncpa [#allocation3], 0
    // Predicated region
    $region2: #{tpu_custom_call.1} parent=1 // pred_check
      _
    $region3: #{tpu_custom_call.1} parent=1 // pred_check_branch
      %10 = sbr.rel (0) target = $region5
    $region4: #{tpu_custom_call.1} parent=1 // pred_region
      _
    $region5: #{tpu_custom_call.1} parent=1 // pred_fallthru
      _
    // Predicated region
    $region6: #{tpu_custom_call.1} parent=1 // pred_check
      _
    $region7: #{tpu_custom_call.1} parent=1 // pred_check_branch
      %12 = sbr.rel (0) target = $region9
    $region8: #{tpu_custom_call.1} parent=1 // pred_region
      _
    $region9: #{tpu_custom_call.1} parent=1 // pred_fallthru
      _
    // Predicated region
    $region10: #{tpu_custom_call.1} parent=1 // pred_check
      _
    $region11: #{tpu_custom_call.1} parent=1 // pred_check_branch
      %14 = sbr.rel (0) target = $region13
    $region12: #{tpu_custom_call.1} parent=1 // pred_region
      _
    $region13: #{tpu_custom_call.1} parent=1 // pred_fallthru
      _
    %v16 = vld [vmem:[%s0] sm:$0xf]
    %v17 = vld [vmem:[%s0 + $0x4] sm:$0xf]
    %v18 = vld [vmem:[%s0 + $0x8] sm:$0xf]
    %v19 = vld [vmem:[%s0 + $0xc] sm:$0xf]
    %v20 = vld [vmem:[%s0 + $0x10] sm:$0xf]
    %v21 = vld [vmem:[%s0 + $0x14] sm:$0xf]
    %v22 = vld [vmem:[%s0 + $0x18] sm:$0xf]
    %v23 = vld [vmem:[%s0 + $0x1c] sm:$0xf]
    %v24 = vld [vmem:[%s0 + $0x20] sm:$0xf]
    %v25 = vld [vmem:[%s0 + $0x24] sm:$0xf]
    %v26 = vld [vmem:[%s0 + $0x28] sm:$0xf]
    %v27 = vld [vmem:[%s0 + $0x2c] sm:$0xf]
    %v28 = vld [vmem:[%s0 + $0x30] sm:$0xf]
    %v29 = vld [vmem:[%s0 + $0x34] sm:$0xf]
    %v30 = vld [vmem:[%s0 + $0x38] sm:$0xf]
    %v31 = vld [vmem:[%s0 + $0x3c] sm:$0xf]
    %v32 = vld [vmem:[%s0 + $0x40] sm:$0xf]
    %v33 = vld [vmem:[%s0 + $0x44] sm:$0xf]
    %v34 = vld [vmem:[%s0 + $0x48] sm:$0xf]
    %v35 = vld [vmem:[%s0 + $0x4c] sm:$0xf]
    %v36 = vld [vmem:[%s0 + $0x50] sm:$0xf]
    %v37 = vld [vmem:[%s0 + $0x54] sm:$0xf]
    %v38 = vld [vmem:[%s0 + $0x58] sm:$0xf]
    %v39 = vld [vmem:[%s0 + $0x5c] sm:$0xf]
    %v40 = vld [vmem:[%s0 + $0x60] sm:$0xf]
    %v41 = vld [vmem:[%s0 + $0x64] sm:$0xf]
    %v42 = vld [vmem:[%s0 + $0x68] sm:$0xf]
    %v43 = vld [vmem:[%s0 + $0x6c] sm:$0xf]
    %v44 = vld [vmem:[%s0 + $0x70] sm:$0xf]
    %v45 = vld [vmem:[%s0 + $0x74] sm:$0xf]
    %v46 = vld [vmem:[%s0 + $0x78] sm:$0xf]
    %v47 = vld [vmem:[%s0 + $0x7c] sm:$0xf]
    %v48 = vld [vmem:[%s0 + $0x80] sm:$0xf]
    %v49 = vld [vmem:[%s0 + $0x84] sm:$0xf]
    %v50 = vld [vmem:[%s0 + $0x88] sm:$0xf]
    %v51 = vld [vmem:[%s0 + $0x8c] sm:$0xf]
    %v52 = vld [vmem:[%s0 + $0x90] sm:$0xf]
    %v53 = vld [vmem:[%s0 + $0x94] sm:$0xf]
    %v54 = vld [vmem:[%s0 + $0x98] sm:$0xf]
    %v55 = vld [vmem:[%s0 + $0x9c] sm:$0xf]
    %v56 = vld [vmem:[%s0 + $0xa0] sm:$0xf]
    %v57 = vld [vmem:[%s0 + $0xa4] sm:$0xf]
    %v58 = vld [vmem:[%s0 + $0xa8] sm:$0xf]
    %v59 = vld [vmem:[%s0 + $0xac] sm:$0xf]
    %v60 = vld [vmem:[%s0 + $0xb0] sm:$0xf]
    %v61 = vld [vmem:[%s0 + $0xb4] sm:$0xf]
    %v62 = vld [vmem:[%s0 + $0xb8] sm:$0xf]
    %v63 = vld [vmem:[%s0 + $0xbc] sm:$0xf]
    %v64 = vld [vmem:[%s0 + $0xc0] sm:$0xf]
    %v65 = vld [vmem:[%s0 + $0xc4] sm:$0xf]
    %v66 = vld [vmem:[%s1] sm:$0xf]
    %v67 = vld [vmem:[%s1 + $0x4] sm:$0xf]
    %v68 = vld [vmem:[%s1 + $0x8] sm:$0xf]
    %v69 = vld [vmem:[%s1 + $0xc] sm:$0xf]
    %v70 = vld [vmem:[%s1 + $0x10] sm:$0x3]
    %v71 = vld [vmem:[%s2] sm:$0x1]
    %v73 = vperm.slane %v71, 0
    %v125 = vunpack.c.l.b16 %v16
    %v126 = vunpack.c.l.b16 %v17
    %v127 = vunpack.c.l.b16 %v18
    %v128 = vunpack.c.l.b16 %v19
    %v129 = vunpack.c.l.b16 %v20
    %v130 = vunpack.c.l.b16 %v21
    %v131 = vunpack.c.l.b16 %v22
    %v132 = vunpack.c.l.b16 %v23
    %v133 = vunpack.c.l.b16 %v24
    %v134 = vunpack.c.l.b16 %v25
    %v135 = vunpack.c.l.b16 %v26
    %v136 = vunpack.c.l.b16 %v27
    %v137 = vunpack.c.l.b16 %v28
    %v138 = vunpack.c.l.b16 %v29
    %v139 = vunpack.c.l.b16 %v30
    %v140 = vunpack.c.l.b16 %v31
    %v141 = vunpack.c.l.b16 %v32
    %v142 = vunpack.c.l.b16 %v33
    %v143 = vunpack.c.l.b16 %v34
    %v144 = vunpack.c.l.b16 %v35
    %v145 = vunpack.c.l.b16 %v36
    %v146 = vunpack.c.l.b16 %v37
    %v147 = vunpack.c.l.b16 %v38
    %v148 = vunpack.c.l.b16 %v39
    %v149 = vunpack.c.l.b16 %v40
    %v150 = vunpack.c.l.b16 %v41
    %v151 = vunpack.c.l.b16 %v42
    %v152 = vunpack.c.l.b16 %v43
    %v153 = vunpack.c.l.b16 %v44
    %v154 = vunpack.c.l.b16 %v45
    %v155 = vunpack.c.l.b16 %v46
    %v156 = vunpack.c.l.b16 %v47
    %v157 = vunpack.c.l.b16 %v48
    %v158 = vunpack.c.l.b16 %v49
    %v159 = vunpack.c.l.b16 %v50
    %v160 = vunpack.c.l.b16 %v51
    %v161 = vunpack.c.l.b16 %v52
    %v162 = vunpack.c.l.b16 %v53
    %v163 = vunpack.c.l.b16 %v54
    %v164 = vunpack.c.l.b16 %v55
    %v165 = vunpack.c.l.b16 %v56
    %v166 = vunpack.c.l.b16 %v57
    %v167 = vunpack.c.l.b16 %v58
    %v168 = vunpack.c.l.b16 %v59
    %v169 = vunpack.c.l.b16 %v60
    %v170 = vunpack.c.l.b16 %v61
    %v171 = vunpack.c.l.b16 %v62
    %v172 = vunpack.c.l.b16 %v63
    %v173 = vunpack.c.l.b16 %v64
    %v174 = vunpack.c.l.b16 %v65
    %v175 = vpack.c.b16 %v126, %v125
    %v176 = vpack.c.b16 %v128, %v127
    %v177 = vpack.c.b16 %v130, %v129
    %v178 = vpack.c.b16 %v132, %v131
    %v179 = vpack.c.b16 %v134, %v133
    %v180 = vpack.c.b16 %v136, %v135
    %v181 = vpack.c.b16 %v138, %v137
    %v182 = vpack.c.b16 %v140, %v139
    %v183 = vpack.c.b16 %v142, %v141
    %v184 = vpack.c.b16 %v144, %v143
    %v185 = vpack.c.b16 %v146, %v145
    %v186 = vpack.c.b16 %v148, %v147
    %v187 = vpack.c.b16 %v150, %v149
    %v188 = vpack.c.b16 %v152, %v151
    %v189 = vpack.c.b16 %v154, %v153
    %v190 = vpack.c.b16 %v156, %v155
    %v191 = vpack.c.b16 %v158, %v157
    %v192 = vpack.c.b16 %v160, %v159
    %v193 = vpack.c.b16 %v162, %v161
    %v194 = vpack.c.b16 %v164, %v163
    %v195 = vpack.c.b16 %v166, %v165
    %v196 = vpack.c.b16 %v168, %v167
    %v197 = vpack.c.b16 %v170, %v169
    %v198 = vpack.c.b16 %v172, %v171
    %v199 = vpack.c.b16 %v174, %v173
    %v205 = vunpack.c.l.b16 %v66
    %v206 = vunpack.c.l.b16 %v67
    %v207 = vunpack.c.l.b16 %v68
    %v208 = vunpack.c.l.b16 %v69
    %v209 = vunpack.c.l.b16 %v70
    %v210 = vpack.c.b16 %v206, %v205
    %v211 = vpack.c.b16 %v208, %v207
    %v212 = vpack.c.b16 %v209, %v209
    %vm215 = vcmask 293888
    %v217 = vsel %vm215, %v175, 0
    %v220 = vsel %vm215, %v176, 0
    %v223 = vsel %vm215, %v177, 0
    %v226 = vsel %vm215, %v178, 0
    %v229 = vsel %vm215, %v179, 0
    %v232 = vsel %vm215, %v180, 0
    %v235 = vsel %vm215, %v181, 0
    %v238 = vsel %vm215, %v182, 0
    %v241 = vsel %vm215, %v183, 0
    %v244 = vsel %vm215, %v184, 0
    %v247 = vsel %vm215, %v185, 0
    %v250 = vsel %vm215, %v186, 0
    %v253 = vsel %vm215, %v187, 0
    %v256 = vsel %vm215, %v188, 0
    %v259 = vsel %vm215, %v189, 0
    %v262 = vsel %vm215, %v190, 0
    %v265 = vsel %vm215, %v191, 0
    %v268 = vsel %vm215, %v192, 0
    %v271 = vsel %vm215, %v193, 0
    %v274 = vsel %vm215, %v194, 0
    %v277 = vsel %vm215, %v195, 0
    %v280 = vsel %vm215, %v196, 0
    %v283 = vsel %vm215, %v197, 0
    %v286 = vsel %vm215, %v198, 0
    %v289 = vsel %vm215, %v199, 0
    %vm291 = vcmask 1041408
    %v293 = vsel %vm291, %v212, 0
    %295 = vmatpush.bf16.msra.mxu0 0
    %296 = vmatpush.bf16.msra.mxu0 0
    %297 = vmatpush.bf16.msra.mxu0 0
    %298 = vmatpush.bf16.msra.mxu0 0
    %299 = vmatpush.bf16.msra.mxu0 0
    %300 = vmatpush.bf16.msra.mxu0 %v293
    %301 = vmatpush.bf16.msra.mxu0 %v211
    %302 = vmatpush.bf16.msra.mxu0 %v210
    %303 = vmatmul.bf16.gmra.mxu0 %v217
    %v304 = vpop.f32.mrf.mxu0
    %v305 = vadd.f32 %v73, %v304
    %v306 = vpop.f32.mrf.mxu0
    %v307 = vadd.f32 %v73, %v306
    %308 = vmatmul.bf16.gmra.mxu0 %v220
    %v309 = vpop.f32.mrf.mxu0
    %v310 = vadd.f32 %v73, %v309
    %v311 = vpop.f32.mrf.mxu0
    %v312 = vadd.f32 %v73, %v311
    %313 = vmatmul.bf16.gmra.mxu0 %v223
    %v314 = vpop.f32.mrf.mxu0
    %v315 = vadd.f32 %v73, %v314
    %v316 = vpop.f32.mrf.mxu0
    %v317 = vadd.f32 %v73, %v316
    %318 = vmatmul.bf16.gmra.mxu0 %v226
    %v319 = vpop.f32.mrf.mxu0
    %v320 = vadd.f32 %v73, %v319
    %v321 = vpop.f32.mrf.mxu0
    %v322 = vadd.f32 %v73, %v321
    %323 = vmatmul.bf16.gmra.mxu0 %v229
    %v324 = vpop.f32.mrf.mxu0
    %v325 = vadd.f32 %v73, %v324
    %v326 = vpop.f32.mrf.mxu0
    %v327 = vadd.f32 %v73, %v326
    %328 = vmatmul.bf16.gmra.mxu0 %v232
    %v329 = vpop.f32.mrf.mxu0
    %v330 = vadd.f32 %v73, %v329
    %v331 = vpop.f32.mrf.mxu0
    %v332 = vadd.f32 %v73, %v331
    %333 = vmatmul.bf16.gmra.mxu0 %v235
    %v334 = vpop.f32.mrf.mxu0
    %v335 = vadd.f32 %v73, %v334
    %v336 = vpop.f32.mrf.mxu0
    %v337 = vadd.f32 %v73, %v336
    %338 = vmatmul.bf16.gmra.mxu0 %v238
    %v339 = vpop.f32.mrf.mxu0
    %v340 = vadd.f32 %v73, %v339
    %v341 = vpop.f32.mrf.mxu0
    %v342 = vadd.f32 %v73, %v341
    %343 = vmatmul.bf16.gmra.mxu0 %v241
    %v344 = vpop.f32.mrf.mxu0
    %v345 = vadd.f32 %v73, %v344
    %v346 = vpop.f32.mrf.mxu0
    %v347 = vadd.f32 %v73, %v346
    %348 = vmatmul.bf16.gmra.mxu0 %v244
    %v349 = vpop.f32.mrf.mxu0
    %v350 = vadd.f32 %v73, %v349
    %v351 = vpop.f32.mrf.mxu0
    %v352 = vadd.f32 %v73, %v351
    %353 = vmatmul.bf16.gmra.mxu0 %v247
    %v354 = vpop.f32.mrf.mxu0
    %v355 = vadd.f32 %v73, %v354
    %v356 = vpop.f32.mrf.mxu0
    %v357 = vadd.f32 %v73, %v356
    %358 = vmatmul.bf16.gmra.mxu0 %v250
    %v359 = vpop.f32.mrf.mxu0
    %v360 = vadd.f32 %v73, %v359
    %v361 = vpop.f32.mrf.mxu0
    %v362 = vadd.f32 %v73, %v361
    %363 = vmatmul.bf16.gmra.mxu0 %v253
    %v364 = vpop.f32.mrf.mxu0
    %v365 = vadd.f32 %v73, %v364
    %v366 = vpop.f32.mrf.mxu0
    %v367 = vadd.f32 %v73, %v366
    %368 = vmatmul.bf16.gmra.mxu0 %v256
    %v369 = vpop.f32.mrf.mxu0
    %v370 = vadd.f32 %v73, %v369
    %v371 = vpop.f32.mrf.mxu0
    %v372 = vadd.f32 %v73, %v371
    %373 = vmatmul.bf16.gmra.mxu0 %v259
    %v374 = vpop.f32.mrf.mxu0
    %v375 = vadd.f32 %v73, %v374
    %v376 = vpop.f32.mrf.mxu0
    %v377 = vadd.f32 %v73, %v376
    %378 = vmatmul.bf16.gmra.mxu0 %v262
    %v379 = vpop.f32.mrf.mxu0
    %v380 = vadd.f32 %v73, %v379
    %v381 = vpop.f32.mrf.mxu0
    %v382 = vadd.f32 %v73, %v381
    %383 = vmatmul.bf16.gmra.mxu0 %v265
    %v384 = vpop.f32.mrf.mxu0
    %v385 = vadd.f32 %v73, %v384
    %v386 = vpop.f32.mrf.mxu0
    %v387 = vadd.f32 %v73, %v386
    %388 = vmatmul.bf16.gmra.mxu0 %v268
    %v389 = vpop.f32.mrf.mxu0
    %v390 = vadd.f32 %v73, %v389
    %v391 = vpop.f32.mrf.mxu0
    %v392 = vadd.f32 %v73, %v391
    %393 = vmatmul.bf16.gmra.mxu0 %v271
    %v394 = vpop.f32.mrf.mxu0
    %v395 = vadd.f32 %v73, %v394
    %v396 = vpop.f32.mrf.mxu0
    %v397 = vadd.f32 %v73, %v396
    %398 = vmatmul.bf16.gmra.mxu0 %v274
    %v399 = vpop.f32.mrf.mxu0
    %v400 = vadd.f32 %v73, %v399
    %v401 = vpop.f32.mrf.mxu0
    %v402 = vadd.f32 %v73, %v401
    %403 = vmatmul.bf16.gmra.mxu0 %v277
    %v404 = vpop.f32.mrf.mxu0
    %v405 = vadd.f32 %v73, %v404
    %v406 = vpop.f32.mrf.mxu0
    %v407 = vadd.f32 %v73, %v406
    %408 = vmatmul.bf16.gmra.mxu0 %v280
    %v409 = vpop.f32.mrf.mxu0
    %v410 = vadd.f32 %v73, %v409
    %v411 = vpop.f32.mrf.mxu0
    %v412 = vadd.f32 %v73, %v411
    %413 = vmatmul.bf16.gmra.mxu0 %v283
    %v414 = vpop.f32.mrf.mxu0
    %v415 = vadd.f32 %v73, %v414
    %v416 = vpop.f32.mrf.mxu0
    %v417 = vadd.f32 %v73, %v416
    %418 = vmatmul.bf16.gmra.mxu0 %v286
    %v419 = vpop.f32.mrf.mxu0
    %v420 = vadd.f32 %v73, %v419
    %v421 = vpop.f32.mrf.mxu0
    %v422 = vadd.f32 %v73, %v421
    %423 = vmatmul.bf16.gmra.mxu0 %v289
    %v424 = vpop.f32.mrf.mxu0
    %v425 = vadd.f32 %v73, %v424
    %v426 = vpop.f32.mrf.mxu0
    %v427 = vadd.f32 %v73, %v426
    %428 = vdwg.mxu0
    %429 = vst [vmem:[#allocation2] sm:$0xff] %v305
    %430 = vst [vmem:[#allocation2 + $0x8] sm:$0xff] %v307
    %431 = vst [vmem:[#allocation2 + $0x10] sm:$0xff] %v310
    %432 = vst [vmem:[#allocation2 + $0x18] sm:$0xff] %v312
    %433 = vst [vmem:[#allocation2 + $0x20] sm:$0xff] %v315
    %434 = vst [vmem:[#allocation2 + $0x28] sm:$0xff] %v317
    %435 = vst [vmem:[#allocation2 + $0x30] sm:$0xff] %v320
    %436 = vst [vmem:[#allocation2 + $0x38] sm:$0xff] %v322
    %437 = vst [vmem:[#allocation2 + $0x40] sm:$0xff] %v325
    %438 = vst [vmem:[#allocation2 + $0x48] sm:$0xff] %v327
    %439 = vst [vmem:[#allocation2 + $0x50] sm:$0xff] %v330
    %440 = vst [vmem:[#allocation2 + $0x58] sm:$0xff] %v332
    %441 = vst [vmem:[#allocation2 + $0x60] sm:$0xff] %v335
    %442 = vst [vmem:[#allocation2 + $0x68] sm:$0xff] %v337
    %443 = vst [vmem:[#allocation2 + $0x70] sm:$0xff] %v340
    %444 = vst [vmem:[#allocation2 + $0x78] sm:$0xff] %v342
    %445 = vst [vmem:[#allocation2 + $0x80] sm:$0xff] %v345
    %446 = vst [vmem:[#allocation2 + $0x88] sm:$0xff] %v347
    %447 = vst [vmem:[#allocation2 + $0x90] sm:$0xff] %v350
    %448 = vst [vmem:[#allocation2 + $0x98] sm:$0xff] %v352
    %449 = vst [vmem:[#allocation2 + $0xa0] sm:$0xff] %v355
    %450 = vst [vmem:[#allocation2 + $0xa8] sm:$0xff] %v357
    %451 = vst [vmem:[#allocation2 + $0xb0] sm:$0xff] %v360
    %452 = vst [vmem:[#allocation2 + $0xb8] sm:$0xff] %v362
    %453 = vst [vmem:[#allocation2 + $0xc0] sm:$0xff] %v365
    %454 = vst [vmem:[#allocation2 + $0xc8] sm:$0xff] %v367
    %455 = vst [vmem:[#allocation2 + $0xd0] sm:$0xff] %v370
    %456 = vst [vmem:[#allocation2 + $0xd8] sm:$0xff] %v372
    %457 = vst [vmem:[#allocation2 + $0xe0] sm:$0xff] %v375
    %458 = vst [vmem:[#allocation2 + $0xe8] sm:$0xff] %v377
    %459 = vst [vmem:[#allocation2 + $0xf0] sm:$0xff] %v380
    %460 = vst [vmem:[#allocation2 + $0xf8] sm:$0xff] %v382
    %461 = vst [vmem:[#allocation2 + $0x100] sm:$0xff] %v385
    %462 = vst [vmem:[#allocation2 + $0x108] sm:$0xff] %v387
    %463 = vst [vmem:[#allocation2 + $0x110] sm:$0xff] %v390
    %464 = vst [vmem:[#allocation2 + $0x118] sm:$0xff] %v392
    %465 = vst [vmem:[#allocation2 + $0x120] sm:$0xff] %v395
    %466 = vst [vmem:[#allocation2 + $0x128] sm:$0xff] %v397
    %467 = vst [vmem:[#allocation2 + $0x130] sm:$0xff] %v400
    %468 = vst [vmem:[#allocation2 + $0x138] sm:$0xff] %v402
    %469 = vst [vmem:[#allocation2 + $0x140] sm:$0xff] %v405
    %470 = vst [vmem:[#allocation2 + $0x148] sm:$0xff] %v407
    %471 = vst [vmem:[#allocation2 + $0x150] sm:$0xff] %v410
    %472 = vst [vmem:[#allocation2 + $0x158] sm:$0xff] %v412
    %473 = vst [vmem:[#allocation2 + $0x160] sm:$0xff] %v415
    %474 = vst [vmem:[#allocation2 + $0x168] sm:$0xff] %v417
    %475 = vst [vmem:[#allocation2 + $0x170] sm:$0xff] %v420
    %476 = vst [vmem:[#allocation2 + $0x178] sm:$0xff] %v422
    %477 = vst [vmem:[#allocation2 + $0x180] sm:$0xff] %v425
    %478 = vst [vmem:[#allocation2 + $0x188] sm:$0xff] %v427
    // Predicated region
    $region14: #{tpu_custom_call.1} parent=1 // pred_check
      _
    $region15: #{tpu_custom_call.1} parent=1 // pred_check_branch
      %480 = sbr.rel (0) target = $region17
    $region16: #{tpu_custom_call.1} parent=1 // pred_region
      %482 = vsyncadd [#allocation3], 0
      %s483 = sshll.u32 [#allocation2], 4
      %s484 = int_to_ptr.vmem [resolvable:$true] %s483
      %s485 = sshll.u32 %s3, 4
      %s486 = int_to_ptr.hbm [resolvable:$true] %s485
      %491 = dma.vmem_to_hbm [thread:$0]  %s484, 6400, %s486, [#allocation3], 128, 128, 8
    $region17: #{tpu_custom_call.1} parent=1 // pred_fallthru
      _
    // Predicated region
    $region18: #{tpu_custom_call.1} parent=1 // pred_check
      _
    $region19: #{tpu_custom_call.1} parent=1 // pred_check_branch
      %493 = sbr.rel (0) target = $region21
    $region20: #{tpu_custom_call.1} parent=1 // pred_region
      %495 = dma.done [#allocation3], 6400
    $region21: #{tpu_custom_call.1} parent=1 // pred_fallthru
      _
    %496 = vsyncpa [#allocation3], 1

</llo_original>
